<compile_context>
chip_gen: v7x
topology: tpu7x:2x2x1
jax: 0.10.0
libtpu: 0.0.40
codegen_flags: <defaults>
</compile_context>

<pallas_src>
import functools

import jax
import jax.numpy as jnp
from jax.experimental import pallas as pl
from jax.experimental.pallas import tpu as pltpu


def _round_up(x, m):
    return (x + m - 1) // m * m


def _ff_geglu_kernel(x_ref, wh_ref, bh_ref, wg_ref, bg_ref, w2_ref, b2_ref, o_ref):
    # x_ref : (TM, D)            token tile (native dtype -> native MXU path)
    # wh_ref: (D, inner)         "hidden" half of W1^T
    # wg_ref: (D, inner)         "gate"   half of W1^T
    # w2_ref: (inner, Dout_p)    W2^T, output dim zero-padded to 128-lane multiple
    # b*_ref: (1, ...)           biases (added in f32)
    # o_ref : (TM, Dout_p)
    x = x_ref[...]

    # First projection, GEGLU halves computed separately; each half is consumed
    # right after its matmul so the full (TM, 2*inner) slab is never live.
    h = jnp.dot(x, wh_ref[...], preferred_element_type=jnp.float32)
    h = h + bh_ref[...].astype(jnp.float32)
    g = jnp.dot(x, wg_ref[...], preferred_element_type=jnp.float32)
    g = g + bg_ref[...].astype(jnp.float32)

    # Exact (erf-based) GELU, matching torch.nn.functional.gelu default; erf -> EUP.
    inv_sqrt2 = jnp.float32(0.7071067811865476)
    gelu_g = jnp.float32(0.5) * g * (jnp.float32(1.0) + jax.lax.erf(g * inv_sqrt2))

    act = (h * gelu_g).astype(w2_ref.dtype)   # GEGLU output, (TM, inner)
    # Dropout(p=0.0) is identity -> nothing to do.

    out = jnp.dot(act, w2_ref[...], preferred_element_type=jnp.float32)
    out = out + b2_ref[...].astype(jnp.float32)
    o_ref[...] = out.astype(o_ref.dtype)


def prepare_feedforward_params(w1, b1, w2, b2, *, param_dtype=None):
    """One-time weight preprocessing, hoisted out of the per-forward path.

    Takes PyTorch-layout params (w1: (2*inner, D), b1: (2*inner,),
    w2: (dim_out, inner), b2: (dim_out,)) and returns MXU-friendly tensors:
    W1^T split into hidden/gate halves, W2^T with the output dim zero-padded to
    a multiple of 128 lanes (dense stores). Optionally casts the weight
    matrices to `param_dtype` (e.g. jnp.bfloat16) for native MXU operands.
    """
    two_inner, _ = w1.shape
    inner = two_inner // 2
    dim_out = w2.shape[0]
    dim_out_p = _round_up(dim_out, 128)

    w1_t = jnp.transpose(w1)                       # (D, 2*inner)
    wh, wg = w1_t[:, :inner], w1_t[:, inner:]
    bh = b1[:inner].reshape(1, inner)
    bg = b1[inner:].reshape(1, inner)

    w2_t = jnp.transpose(w2)                       # (inner, dim_out)
    w2_t = jnp.pad(w2_t, ((0, 0), (0, dim_out_p - dim_out)))
    b2_p = jnp.pad(b2, (0, dim_out_p - dim_out)).reshape(1, dim_out_p)

    if param_dtype is not None:                    # bf16 for real model widths
        wh, wg, w2_t = (a.astype(param_dtype) for a in (wh, wg, w2_t))

    return wh, bh, wg, bg, w2_t, b2_p, dim_out


@functools.partial(jax.jit, static_argnames=("dim_out", "token_tile"))
def feedforward_geglu(x, wh, bh, wg, bg, w2_t, b2_p, *, dim_out, token_tile=256):
    """x: (B, S, D). Remaining args come from prepare_feedforward_params()."""
    B, S, D = x.shape
    inner = wh.shape[1]
    dim_out_p = w2_t.shape[1]

    N = B * S
    # Token tile: large (256 default) to keep MXU rows busy; clamped for tiny N
    # and forced to a multiple of 8 sublanes. N is zero-padded up to a tile
    # multiple so arbitrary token counts work (padding sliced off below).
    tile = max(8, min(_round_up(token_tile, 8), _round_up(N, 8)))
    n_pad = _round_up(N, tile)

    x2 = x.reshape(N, D)
    if n_pad != N:
        x2 = jnp.pad(x2, ((0, n_pad - N), (0, 0)))

    # VMEM budget: resident weights (double-buffered by default BlockSpec
    # pipelining), double-buffered in/out token tiles, f32 intermediates.
    # NOTE: for very wide models, use bf16 weights (prepare_feedforward_params
    # param_dtype) and/or add a K-split grid axis over `inner`.
    w_bytes = wh.dtype.itemsize
    x_bytes = x.dtype.itemsize
    weight_bytes = (2 * D * inner + inner * dim_out_p) * w_bytes
    io_bytes = 2 * tile * (D + dim_out_p) * x_bytes
    interm_bytes = tile * (2 * inner + dim_out_p) * 4
    vmem_limit = int(max(32 << 20,
                         min(2 * weight_bytes + io_bytes + interm_bytes + (8 << 20),
                             64 << 20)))

    cost = pl.CostEstimate(
        flops=2 * n_pad * (D * 2 * inner + inner * dim_out_p),
        transcendentals=n_pad * inner,
        bytes_accessed=(n_pad * D * x_bytes + weight_bytes
                        + n_pad * dim_out_p * x_bytes),
    )

    out = pl.pallas_call(
        _ff_geglu_kernel,
        out_shape=jax.ShapeDtypeStruct((n_pad, dim_out_p), x.dtype),
        grid_spec=pltpu.PrefetchScalarGridSpec(
            num_scalar_prefetch=0,
            grid=(n_pad // tile,),
            in_specs=[
                pl.BlockSpec((tile, D), lambda i: (i, 0)),
                pl.BlockSpec((D, inner), lambda i: (0, 0)),
                pl.BlockSpec((1, inner), lambda i: (0, 0)),
                pl.BlockSpec((D, inner), lambda i: (0, 0)),
                pl.BlockSpec((1, inner), lambda i: (0, 0)),
                pl.BlockSpec((inner, dim_out_p), lambda i: (0, 0)),
                pl.BlockSpec((1, dim_out_p), lambda i: (0, 0)),
            ],
            out_specs=pl.BlockSpec((tile, dim_out_p), lambda i: (i, 0)),
        ),
        compiler_params=pltpu.CompilerParams(
            dimension_semantics=("parallel",),
            vmem_limit_bytes=vmem_limit,
        ),
        cost_estimate=cost,
    )(x2, wh, bh, wg, bg, w2_t, b2_p)

    out = out[:N, :dim_out]
    return out.reshape(B, S, dim_out)


def _reference(x, w1, b1, w2, b2):
    """Pure-JAX reference of FeedForward(GEGLU, dropout=0)."""
    proj = jnp.einsum("bsd,od->bso", x, w1) + b1
    inner = w2.shape[1]
    h, g = proj[..., :inner], proj[..., inner:]
    gelu_g = 0.5 * g * (1.0 + jax.lax.erf(g / jnp.sqrt(2.0)))
    act = h * gelu_g
    return jnp.einsum("bsi,oi->bso", act, w2) + b2


if __name__ == "__main__":
    # FeedForward(dim=32, mult=4, activation_fn='geglu') -> inner_dim=128, dim_out=32
    B, S, dim = 2, 8, 32
    mult = 4
    inner_dim = dim * mult            # 128
    dim_out = dim                     # 32

    key = jax.random.PRNGKey(0)
    k_x, k_w1, k_b1, k_w2, k_b2 = jax.random.split(key, 5)

    x = jax.random.normal(k_x, (B, S, dim), dtype=jnp.float32)

    # Deterministic parameter init (PyTorch-Linear-like uniform fan-in scaling).
    bound1 = 1.0 / jnp.sqrt(dim)
    w1 = jax.random.uniform(k_w1, (2 * inner_dim, dim), jnp.float32, -bound1, bound1)
    b1 = jax.random.uniform(k_b1, (2 * inner_dim,), jnp.float32, -bound1, bound1)
    bound2 = 1.0 / jnp.sqrt(inner_dim)
    w2 = jax.random.uniform(k_w2, (dim_out, inner_dim), jnp.float32, -bound2, bound2)
    b2 = jax.random.uniform(k_b2, (dim_out,), jnp.float32, -bound2, bound2)

    # One-time prep (hoisted): transpose, split GEGLU halves, lane-pad dim_out.
    # For real model widths pass param_dtype=jnp.bfloat16 here.
    wh, bh, wg, bg, w2_t, b2_p, d_out = prepare_feedforward_params(w1, b1, w2, b2)

    y = feedforward_geglu(x, wh, bh, wg, bg, w2_t, b2_p,
                          dim_out=d_out, token_tile=256)
    y = jax.block_until_ready(y)

    y_ref = _reference(x, w1, b1, w2, b2)
    assert y.shape == (B, S, dim_out)
    assert jnp.allclose(y, y_ref, atol=1e-4, rtol=1e-4), "mismatch vs reference"

    print("KERNEL_OK")
</pallas_src>

<mosaic_0001>
module attributes {stable_mosaic.version = 11 : i64} {
  func.func @_ff_geglu_kernel(%arg0: i32, %arg1: memref<16x32xf32, #tpu.memory_space<vmem>>, %arg2: memref<32x128xf32, #tpu.memory_space<vmem>>, %arg3: memref<1x128xf32, #tpu.memory_space<vmem>>, %arg4: memref<32x128xf32, #tpu.memory_space<vmem>>, %arg5: memref<1x128xf32, #tpu.memory_space<vmem>>, %arg6: memref<128x128xf32, #tpu.memory_space<vmem>>, %arg7: memref<1x128xf32, #tpu.memory_space<vmem>>, %arg8: memref<16x128xf32, #tpu.memory_space<vmem>>) attributes {dimension_semantics = [#tpu.dimension_semantics<parallel>], iteration_bounds = array<i64: 1>, scalar_prefetch = 0 : i64, scratch_operands = 0 : i64, tpu.core_type = #tpu.core_type<tc>, window_params = [{transform_indices = @transform_0, window_bounds = array<i64: 16, 32>}, {pipeline_mode = #tpu.pipeline_mode<synchronous>, transform_indices = @transform_1, window_bounds = array<i64: 32, 128>}, {pipeline_mode = #tpu.pipeline_mode<synchronous>, transform_indices = @transform_2, window_bounds = array<i64: 1, 128>}, {pipeline_mode = #tpu.pipeline_mode<synchronous>, transform_indices = @transform_3, window_bounds = array<i64: 32, 128>}, {pipeline_mode = #tpu.pipeline_mode<synchronous>, transform_indices = @transform_4, window_bounds = array<i64: 1, 128>}, {pipeline_mode = #tpu.pipeline_mode<synchronous>, transform_indices = @transform_5, window_bounds = array<i64: 128, 128>}, {pipeline_mode = #tpu.pipeline_mode<synchronous>, transform_indices = @transform_6, window_bounds = array<i64: 1, 128>}, {transform_indices = @transform_7, window_bounds = array<i64: 16, 128>}]} {
    %c0 = arith.constant 0 : index
    %c0_0 = arith.constant 0 : index
    %0 = vector.load %arg1[%c0, %c0_0] : memref<16x32xf32, #tpu.memory_space<vmem>>, vector<16x32xf32>
    %c0_1 = arith.constant 0 : index
    %c0_2 = arith.constant 0 : index
    %1 = vector.load %arg2[%c0_1, %c0_2] : memref<32x128xf32, #tpu.memory_space<vmem>>, vector<32x128xf32>
    %cst = arith.constant dense<0.000000e+00> : vector<16x128xf32>
    %2 = tpu.matmul %0, %1, %cst {dimension_numbers = #tpu.dot_dimension_numbers<[1], [0], [0], [1], [0, 0, 1, 1], [], []>} : vector<16x32xf32>, vector<32x128xf32>, vector<16x128xf32> -> vector<16x128xf32>
    %c0_3 = arith.constant 0 : index
    %c0_4 = arith.constant 0 : index
    %3 = vector.load %arg3[%c0_3, %c0_4] : memref<1x128xf32, #tpu.memory_space<vmem>>, vector<1x128xf32>
    %4 = vector.broadcast %3 : vector<1x128xf32> to vector<16x128xf32>
    %5 = arith.addf %2, %4 : vector<16x128xf32>
    %c0_5 = arith.constant 0 : index
    %c0_6 = arith.constant 0 : index
    %6 = vector.load %arg4[%c0_5, %c0_6] : memref<32x128xf32, #tpu.memory_space<vmem>>, vector<32x128xf32>
    %cst_7 = arith.constant dense<0.000000e+00> : vector<16x128xf32>
    %7 = tpu.matmul %0, %6, %cst_7 {dimension_numbers = #tpu.dot_dimension_numbers<[1], [0], [0], [1], [0, 0, 1, 1], [], []>} : vector<16x32xf32>, vector<32x128xf32>, vector<16x128xf32> -> vector<16x128xf32>
    %c0_8 = arith.constant 0 : index
    %c0_9 = arith.constant 0 : index
    %8 = vector.load %arg5[%c0_8, %c0_9] : memref<1x128xf32, #tpu.memory_space<vmem>>, vector<1x128xf32>
    %9 = vector.broadcast %8 : vector<1x128xf32> to vector<16x128xf32>
    %10 = arith.addf %7, %9 : vector<16x128xf32>
    %cst_10 = arith.constant 5.000000e-01 : f32
    %11 = vector.broadcast %cst_10 : f32 to vector<16x128xf32>
    %12 = arith.mulf %11, %10 : vector<16x128xf32>
    %cst_11 = arith.constant 0.707106769 : f32
    %13 = vector.broadcast %cst_11 : f32 to vector<16x128xf32>
    %14 = arith.mulf %10, %13 : vector<16x128xf32>
    %15 = math.erf %14 : vector<16x128xf32>
    %cst_12 = arith.constant 1.000000e+00 : f32
    %16 = vector.broadcast %cst_12 : f32 to vector<16x128xf32>
    %17 = arith.addf %16, %15 : vector<16x128xf32>
    %18 = arith.mulf %12, %17 : vector<16x128xf32>
    %19 = arith.mulf %5, %18 : vector<16x128xf32>
    %c0_13 = arith.constant 0 : index
    %c0_14 = arith.constant 0 : index
    %20 = vector.load %arg6[%c0_13, %c0_14] : memref<128x128xf32, #tpu.memory_space<vmem>>, vector<128x128xf32>
    %cst_15 = arith.constant dense<0.000000e+00> : vector<16x128xf32>
    %21 = tpu.matmul %19, %20, %cst_15 {dimension_numbers = #tpu.dot_dimension_numbers<[1], [0], [0], [1], [0, 0, 1, 1], [], []>} : vector<16x128xf32>, vector<128x128xf32>, vector<16x128xf32> -> vector<16x128xf32>
    %c0_16 = arith.constant 0 : index
    %c0_17 = arith.constant 0 : index
    %22 = vector.load %arg7[%c0_16, %c0_17] : memref<1x128xf32, #tpu.memory_space<vmem>>, vector<1x128xf32>
    %23 = vector.broadcast %22 : vector<1x128xf32> to vector<16x128xf32>
    %24 = arith.addf %21, %23 : vector<16x128xf32>
    %c0_18 = arith.constant 0 : index
    %c0_19 = arith.constant 0 : index
    %25 = vector.load %arg8[%c0_18, %c0_19] : memref<16x128xf32, #tpu.memory_space<vmem>>, vector<16x128xf32>
    tpu.vector_store %arg8[%c0_18, %c0_19], %24 {strides = array<i32>} : memref<16x128xf32, #tpu.memory_space<vmem>>, vector<16x128xf32>,
    return
  }
  func.func @transform_0(%arg0: i32) -> (i32, i32) {
    %c0_i32 = arith.constant 0 : i32
    %c0_i32_0 = arith.constant 0 : i32
    return %arg0, %c0_i32 : i32, i32
  }
  func.func @transform_1(%arg0: i32) -> (i32, i32) {
    %c0_i32 = arith.constant 0 : i32
    %c0_i32_0 = arith.constant 0 : i32
    %c0_i32_1 = arith.constant 0 : i32
    return %c0_i32, %c0_i32_0 : i32, i32
  }
  func.func @transform_2(%arg0: i32) -> (i32, i32) {
    %c0_i32 = arith.constant 0 : i32
    %c0_i32_0 = arith.constant 0 : i32
    %c0_i32_1 = arith.constant 0 : i32
    return %c0_i32, %c0_i32_0 : i32, i32
  }
  func.func @transform_3(%arg0: i32) -> (i32, i32) {
    %c0_i32 = arith.constant 0 : i32
    %c0_i32_0 = arith.constant 0 : i32
    %c0_i32_1 = arith.constant 0 : i32
    return %c0_i32, %c0_i32_0 : i32, i32
  }
  func.func @transform_4(%arg0: i32) -> (i32, i32) {
    %c0_i32 = arith.constant 0 : i32
    %c0_i32_0 = arith.constant 0 : i32
    %c0_i32_1 = arith.constant 0 : i32
    return %c0_i32, %c0_i32_0 : i32, i32
  }
  func.func @transform_5(%arg0: i32) -> (i32, i32) {
    %c0_i32 = arith.constant 0 : i32
    %c0_i32_0 = arith.constant 0 : i32
    %c0_i32_1 = arith.constant 0 : i32
    return %c0_i32, %c0_i32_0 : i32, i32
  }
  func.func @transform_6(%arg0: i32) -> (i32, i32) {
    %c0_i32 = arith.constant 0 : i32
    %c0_i32_0 = arith.constant 0 : i32
    %c0_i32_1 = arith.constant 0 : i32
    return %c0_i32, %c0_i32_0 : i32, i32
  }
  func.func @transform_7(%arg0: i32) -> (i32, i32) {
    %c0_i32 = arith.constant 0 : i32
    %c0_i32_0 = arith.constant 0 : i32
    return %arg0, %c0_i32 : i32, i32
  }
}

</mosaic_0001>

<llo_original>
// kernel: feedforward_geglu.1
$region0: #{feedforward_geglu.1}
  #allocation0 [shape = 'u32[]', space=smem, size = 0x4, offset = 0x4, fixed_abs, tag = 'smem constant byte address 0x4 - core index']
  #allocation1 [shape = 'u32[144,128]{1,0:T(1,128)}', space=vmem, size = 0x12000, scoped, tag = 'internal scratch']
  %s0 = inlined_call_operand.hbm [shape: f32[16,32], index: 0, kind: input, shape index: {}]
  %s1 = inlined_call_operand.hbm [shape: f32[32,128], index: 1, kind: input, shape index: {}]
  %s2 = inlined_call_operand.vmem [shape: f32[1,128], index: 2, kind: input, shape index: {}]
  %s3 = inlined_call_operand.hbm [shape: f32[32,128], index: 3, kind: input, shape index: {}]
  %s4 = inlined_call_operand.vmem [shape: f32[1,128], index: 4, kind: input, shape index: {}]
  %s5 = inlined_call_operand.hbm [shape: f32[128,128], index: 5, kind: input, shape index: {}]
  %s6 = inlined_call_operand.vmem [shape: f32[1,128], index: 6, kind: input, shape index: {}]
  %s7 = inlined_call_operand.vmem [shape: f32[16,128], index: 7, kind: output, shape index: {}]
  %s8 = sld [smem:[#allocation0]]
  $region54: #{feedforward_geglu.1} parent=0
    _
  %s10 = ssub.s32 1, %s8
  %s11 = scalar_select 0, %s10, %s8
  $region1: #{feedforward_geglu.1} parent=0
    #allocation2 [shape = 'u8[8192]{0}', space=vmem, size = 0x2000, scoped, tag = 'input window, operand 0, single buffered']
    #allocation3 [shape = 's32[1]{0}', space=sflag, size = 0x4, scoped, tag = 'scoped memory for feedforward_geglu.1']
    #allocation4 [shape = 'u8[16384]{0}', space=vmem, size = 0x4000, scoped, tag = 'input window, operand 1, single buffered']
    #allocation5 [shape = 's32[1]{0}', space=sflag, size = 0x4, scoped, tag = 'scoped memory for feedforward_geglu.1']
    #allocation6 [shape = 'u8[16384]{0}', space=vmem, size = 0x4000, scoped, tag = 'input window, operand 3, single buffered']
    #allocation7 [shape = 'u8[65536]{0}', space=vmem, size = 0x10000, scoped, tag = 'input window, operand 5, single buffered']
    #allocation8 [shape = 's32[1]{0}', space=sflag, size = 0x4, scoped, tag = 'scoped memory for feedforward_geglu.1']
    %12 = vsyncpa [#allocation3], 0
    %13 = vsyncpa [#allocation5], 0
    %14 = vsyncpa [#allocation8], 0
    // Predicated region
    $region2: #{feedforward_geglu.1} parent=1 // pred_check
      _
    $region3: #{feedforward_geglu.1} parent=1 // pred_check_branch
      %16 = sbr.rel (0) target = $region5
    $region4: #{feedforward_geglu.1} parent=1 // pred_region
      %s18 = ssub.s32 256, 256
      %19 = vsyncadd [#allocation3], %s18
      %s20 = sshll.u32 [#allocation2], 4
      %s21 = int_to_ptr.vmem [resolvable:$true] %s20
      %26 = dma.hbm_to_vmem [thread:$0]  %s0, 256, %s21, [#allocation3], 128, 128, 8
    $region5: #{feedforward_geglu.1} parent=1 // pred_fallthru
      _
    // Predicated region
    $region6: #{feedforward_geglu.1} parent=1 // pred_check
      _
    $region7: #{feedforward_geglu.1} parent=1 // pred_check_branch
      %28 = sbr.rel (0) target = $region9
    $region8: #{feedforward_geglu.1} parent=1 // pred_region
      %s30 = ssub.s32 512, 512
      %31 = vsyncadd [#allocation5], %s30
      %s32 = sshll.u32 [#allocation4], 4
      %s33 = int_to_ptr.vmem [resolvable:$true] %s32
      %38 = dma.hbm_to_vmem [thread:$0]  %s1, 512, %s33, [#allocation5], 128, 128, 8
    $region9: #{feedforward_geglu.1} parent=1 // pred_fallthru
      _
    // Predicated region
    $region10: #{feedforward_geglu.1} parent=1 // pred_check
      _
    $region11: #{feedforward_geglu.1} parent=1 // pred_check_branch
      %40 = sbr.rel (0) target = $region13
    $region12: #{feedforward_geglu.1} parent=1 // pred_region
      _
    $region13: #{feedforward_geglu.1} parent=1 // pred_fallthru
      _
    // Predicated region
    $region14: #{feedforward_geglu.1} parent=1 // pred_check
      _
    $region15: #{feedforward_geglu.1} parent=1 // pred_check_branch
      %42 = sbr.rel (0) target = $region17
    $region16: #{feedforward_geglu.1} parent=1 // pred_region
      %s44 = ssub.s32 512, 512
      %45 = vsyncadd [#allocation5], %s44
      %s46 = sshll.u32 [#allocation6], 4
      %s47 = int_to_ptr.vmem [resolvable:$true] %s46
      %52 = dma.hbm_to_vmem [thread:$0]  %s3, 512, %s47, [#allocation5], 128, 128, 8
    $region17: #{feedforward_geglu.1} parent=1 // pred_fallthru
      _
    // Predicated region
    $region18: #{feedforward_geglu.1} parent=1 // pred_check
      _
    $region19: #{feedforward_geglu.1} parent=1 // pred_check_branch
      %54 = sbr.rel (0) target = $region21
    $region20: #{feedforward_geglu.1} parent=1 // pred_region
      _
    $region21: #{feedforward_geglu.1} parent=1 // pred_fallthru
      _
    // Predicated region
    $region22: #{feedforward_geglu.1} parent=1 // pred_check
      _
    $region23: #{feedforward_geglu.1} parent=1 // pred_check_branch
      %56 = sbr.rel (0) target = $region25
    $region24: #{feedforward_geglu.1} parent=1 // pred_region
      %s58 = ssub.s32 2048, 2048
      %59 = vsyncadd [#allocation8], %s58
      %s60 = sshll.u32 [#allocation7], 4
      %s61 = int_to_ptr.vmem [resolvable:$true] %s60
      %66 = dma.hbm_to_vmem [thread:$0]  %s5, 2048, %s61, [#allocation8], 128, 128, 8
    $region25: #{feedforward_geglu.1} parent=1 // pred_fallthru
      _
    // Predicated region
    $region26: #{feedforward_geglu.1} parent=1 // pred_check
      _
    $region27: #{feedforward_geglu.1} parent=1 // pred_check_branch
      %68 = sbr.rel (0) target = $region29
    $region28: #{feedforward_geglu.1} parent=1 // pred_region
      _
    $region29: #{feedforward_geglu.1} parent=1 // pred_fallthru
      _
    // Predicated region
    $region30: #{feedforward_geglu.1} parent=1 // pred_check
      _
    $region31: #{feedforward_geglu.1} parent=1 // pred_check_branch
      %70 = sbr.rel (0) target = $region33
    $region32: #{feedforward_geglu.1} parent=1 // pred_region
      %71 = dma.done [#allocation3], 256
    $region33: #{feedforward_geglu.1} parent=1 // pred_fallthru
      _
    // Predicated region
    $region34: #{feedforward_geglu.1} parent=1 // pred_check
      _
    $region35: #{feedforward_geglu.1} parent=1 // pred_check_branch
      %73 = sbr.rel (0) target = $region37
    $region36: #{feedforward_geglu.1} parent=1 // pred_region
      %74 = dma.done [#allocation5], 512
    $region37: #{feedforward_geglu.1} parent=1 // pred_fallthru
      _
    // Predicated region
    $region38: #{feedforward_geglu.1} parent=1 // pred_check
      _
    $region39: #{feedforward_geglu.1} parent=1 // pred_check_branch
      %76 = sbr.rel (0) target = $region41
    $region40: #{feedforward_geglu.1} parent=1 // pred_region
      %77 = dma.done [#allocation5], 512
    $region41: #{feedforward_geglu.1} parent=1 // pred_fallthru
      _
    // Predicated region
    $region42: #{feedforward_geglu.1} parent=1 // pred_check
      _
    $region43: #{feedforward_geglu.1} parent=1 // pred_check_branch
      %79 = sbr.rel (0) target = $region45
    $region44: #{feedforward_geglu.1} parent=1 // pred_region
      %80 = dma.done [#allocation8], 2048
    $region45: #{feedforward_geglu.1} parent=1 // pred_fallthru
      _
    %v81 = vld [vmem:[#allocation2] sm:$0xff]
    %v82 = vld [vmem:[#allocation2 + $0x8] sm:$0xff]
    %v83 = vld [vmem:[#allocation4] sm:$0xff]
    %v84 = vld [vmem:[#allocation4 + $0x8] sm:$0xff]
    %v85 = vld [vmem:[#allocation4 + $0x10] sm:$0xff]
    %v86 = vld [vmem:[#allocation4 + $0x18] sm:$0xff]
    %v87 = vld [vmem:[%s2] sm:$0x1]
    %v89 = vlaneseq
    %v90 = vshrl.u32 %v89, 7
    %v91 = vsub.s32 0, %v90
    %v92 = vrot.slane %v87, %v91
    %vm94 = vcmask 261120
    %v96 = vsel %vm94, %v81, 0
    %v99 = vsel %vm94, %v82, 0
    %101 = vmatprep.subr.mxu0 0.0
    %102 = vmatpush1.msra.mxu0 %v83
    %103 = vmatprep.subr.mxu0 0.0
    %104 = vmatpush1.msra.mxu0 %v84
    %105 = vmatprep.subr.mxu0 0.0
    %106 = vmatpush1.msra.mxu0 %v85
    %107 = vmatprep.subr.mxu0 0.0
    %108 = vmatpush1.msra.mxu0 %v86
    %109 = vmatprep.subr.mxu0 0.0
    %110 = vmatpush1.msra.mxu0 0.0
    %111 = vmatprep.subr.mxu0 0.0
    %112 = vmatpush1.msra.mxu0 0.0
    %113 = vmatprep.subr.mxu0 0.0
    %114 = vmatpush1.msra.mxu0 0.0
    %115 = vmatprep.subr.mxu0 0.0
    %116 = vmatpush1.msra.mxu0 0.0
    %117 = vmatprep.subr.mxu0 0.0
    %118 = vmatpush1.msra.mxu0 0.0
    %119 = vmatprep.subr.mxu0 0.0
    %120 = vmatpush1.msra.mxu0 0.0
    %121 = vmatprep.subr.mxu0 0.0
    %122 = vmatpush1.msra.mxu0 0.0
    %123 = vmatprep.subr.mxu0 0.0
    %124 = vmatpush1.msra.mxu0 0.0
    %125 = vmatprep.subr.mxu0 0.0
    %126 = vmatpush1.msra.mxu0 0.0
    %127 = vmatprep.subr.mxu0 0.0
    %128 = vmatpush1.msra.mxu0 0.0
    %129 = vmatprep.subr.mxu0 0.0
    %130 = vmatpush1.msra.mxu0 0.0
    %131 = vmatprep.subr.mxu0 0.0
    %132 = vmatpush1.msra.mxu0 0.0
    %133 = vmatprep.subr.mxu0 0.0
    %134 = vmatpush1.msra.mxu0 0.0
    %135 = vmatprep.subr.mxu0 0.0
    %136 = vmatpush1.msra.mxu0 0.0
    %137 = vmatprep.subr.mxu0 0.0
    %138 = vmatpush1.msra.mxu0 0.0
    %139 = vmatprep.subr.mxu0 0.0
    %140 = vmatpush1.msra.mxu0 0.0
    %141 = vmatprep.subr.mxu0 0.0
    %142 = vmatpush1.msra.mxu0 0.0
    %143 = vmatprep.subr.mxu0 0.0
    %144 = vmatpush1.msra.mxu0 0.0
    %145 = vmatprep.subr.mxu0 0.0
    %146 = vmatpush1.msra.mxu0 0.0
    %147 = vmatprep.subr.mxu0 0.0
    %148 = vmatpush1.msra.mxu0 0.0
    %149 = vmatprep.subr.mxu0 0.0
    %150 = vmatpush1.msra.mxu0 0.0
    %151 = vmatprep.subr.mxu0 0.0
    %152 = vmatpush1.msra.mxu0 0.0
    %153 = vmatprep.subr.mxu0 0.0
    %154 = vmatpush1.msra.mxu0 0.0
    %155 = vmatprep.subr.mxu0 0.0
    %156 = vmatpush1.msra.mxu0 0.0
    %157 = vmatprep.subr.mxu0 0.0
    %158 = vmatpush1.msra.mxu0 0.0
    %159 = vmatprep.subr.mxu0 0.0
    %160 = vmatpush1.msra.mxu0 0.0
    %161 = vmatprep.subr.mxu0 0.0
    %162 = vmatpush1.msra.mxu0 0.0
    %163 = vmatprep.subr.mxu0 0.0
    %164 = vmatpush1.msra.mxu0 0.0
    %165 = vmatprep.mubr.f32.mxu0 0.0
    %166 = vmatmul.mubr.f32.gmra.mrb[0].mxu0 %v96
    %v167 = vpop.f32.mrb[0].mxu0
    %v168 = vadd.f32 %v92, %v167
    %v169 = vpop.f32.mrb[0].mxu0
    %170 = vmatprep.mubr.f32.mxu0 0.0
    %171 = vmatmul.mubr.f32.gmra.mrb[0].mxu0 %v99
    %v172 = vpop.f32.mrb[0].mxu0
    %v173 = vadd.f32 %v92, %v172
    %v174 = vpop.f32.mrb[0].mxu0
    %175 = vdwg.mxu0
    %v176 = vld [vmem:[#allocation6] sm:$0xff]
    %v177 = vld [vmem:[#allocation6 + $0x8] sm:$0xff]
    %v178 = vld [vmem:[#allocation6 + $0x10] sm:$0xff]
    %v179 = vld [vmem:[#allocation6 + $0x18] sm:$0xff]
    %v180 = vld [vmem:[%s4] sm:$0x1]
    %v182 = vlaneseq
    %v183 = vshrl.u32 %v182, 7
    %v184 = vsub.s32 0, %v183
    %v185 = vrot.slane %v180, %v184
    %187 = vmatprep.subr.mxu0 0.0
    %188 = vmatpush1.msra.mxu0 %v176
    %189 = vmatprep.subr.mxu0 0.0
    %190 = vmatpush1.msra.mxu0 %v177
    %191 = vmatprep.subr.mxu0 0.0
    %192 = vmatpush1.msra.mxu0 %v178
    %193 = vmatprep.subr.mxu0 0.0
    %194 = vmatpush1.msra.mxu0 %v179
    %195 = vmatprep.subr.mxu0 0.0
    %196 = vmatpush1.msra.mxu0 0.0
    %197 = vmatprep.subr.mxu0 0.0
    %198 = vmatpush1.msra.mxu0 0.0
    %199 = vmatprep.subr.mxu0 0.0
    %200 = vmatpush1.msra.mxu0 0.0
    %201 = vmatprep.subr.mxu0 0.0
    %202 = vmatpush1.msra.mxu0 0.0
    %203 = vmatprep.subr.mxu0 0.0
    %204 = vmatpush1.msra.mxu0 0.0
    %205 = vmatprep.subr.mxu0 0.0
    %206 = vmatpush1.msra.mxu0 0.0
    %207 = vmatprep.subr.mxu0 0.0
    %208 = vmatpush1.msra.mxu0 0.0
    %209 = vmatprep.subr.mxu0 0.0
    %210 = vmatpush1.msra.mxu0 0.0
    %211 = vmatprep.subr.mxu0 0.0
    %212 = vmatpush1.msra.mxu0 0.0
    %213 = vmatprep.subr.mxu0 0.0
    %214 = vmatpush1.msra.mxu0 0.0
    %215 = vmatprep.subr.mxu0 0.0
    %216 = vmatpush1.msra.mxu0 0.0
    %217 = vmatprep.subr.mxu0 0.0
    %218 = vmatpush1.msra.mxu0 0.0
    %219 = vmatprep.subr.mxu0 0.0
    %220 = vmatpush1.msra.mxu0 0.0
    %221 = vmatprep.subr.mxu0 0.0
    %222 = vmatpush1.msra.mxu0 0.0
    %223 = vmatprep.subr.mxu0 0.0
    %224 = vmatpush1.msra.mxu0 0.0
    %225 = vmatprep.subr.mxu0 0.0
    %226 = vmatpush1.msra.mxu0 0.0
    %227 = vmatprep.subr.mxu0 0.0
    %228 = vmatpush1.msra.mxu0 0.0
    %229 = vmatprep.subr.mxu0 0.0
    %230 = vmatpush1.msra.mxu0 0.0
    %231 = vmatprep.subr.mxu0 0.0
    %232 = vmatpush1.msra.mxu0 0.0
    %233 = vmatprep.subr.mxu0 0.0
    %234 = vmatpush1.msra.mxu0 0.0
    %235 = vmatprep.subr.mxu0 0.0
    %236 = vmatpush1.msra.mxu0 0.0
    %237 = vmatprep.subr.mxu0 0.0
    %238 = vmatpush1.msra.mxu0 0.0
    %239 = vmatprep.subr.mxu0 0.0
    %240 = vmatpush1.msra.mxu0 0.0
    %241 = vmatprep.subr.mxu0 0.0
    %242 = vmatpush1.msra.mxu0 0.0
    %243 = vmatprep.subr.mxu0 0.0
    %244 = vmatpush1.msra.mxu0 0.0
    %245 = vmatprep.subr.mxu0 0.0
    %246 = vmatpush1.msra.mxu0 0.0
    %247 = vmatprep.subr.mxu0 0.0
    %248 = vmatpush1.msra.mxu0 0.0
    %249 = vmatprep.subr.mxu0 0.0
    %250 = vmatpush1.msra.mxu0 0.0
    %251 = vmatprep.mubr.f32.mxu0 0.0
    %252 = vmatmul.mubr.f32.gmra.mrb[0].mxu0 %v96
    %v253 = vpop.f32.mrb[0].mxu0
    %v254 = vadd.f32 %v185, %v253
    %v255 = vpop.f32.mrb[0].mxu0
    %256 = vmatprep.mubr.f32.mxu0 0.0
    %257 = vmatmul.mubr.f32.gmra.mrb[0].mxu0 %v99
    %v258 = vpop.f32.mrb[0].mxu0
    %v259 = vadd.f32 %v185, %v258
    %v260 = vpop.f32.mrb[0].mxu0
    %261 = vdwg.mxu0
    %v262 = vmul.f32 %v254, 0.5
    %v263 = vmul.f32 %v259, 0.5
    %v264 = vmul.f32 %v254, 0.70710677
    %v265 = vmul.f32 %v259, 0.70710677
    %v266 = verf.f32.pop %v264
    %v267 = verf.f32.pop %v265
    %v268 = vadd.f32 %v266, 1.0
    %v269 = vadd.f32 %v267, 1.0
    %v270 = vmul.f32 %v262, %v268
    %v271 = vmul.f32 %v263, %v269
    %v272 = vmul.f32 %v168, %v270
    %v273 = vmul.f32 %v173, %v271
    %v274 = vld [vmem:[#allocation7] sm:$0xff]
    %v275 = vld [vmem:[#allocation7 + $0x8] sm:$0xff]
    %v276 = vld [vmem:[#allocation7 + $0x10] sm:$0xff]
    %v277 = vld [vmem:[#allocation7 + $0x18] sm:$0xff]
    %v278 = vld [vmem:[#allocation7 + $0x20] sm:$0xff]
    %v279 = vld [vmem:[#allocation7 + $0x28] sm:$0xff]
    %v280 = vld [vmem:[#allocation7 + $0x30] sm:$0xff]
    %v281 = vld [vmem:[#allocation7 + $0x38] sm:$0xff]
    %v282 = vld [vmem:[#allocation7 + $0x40] sm:$0xff]
    %v283 = vld [vmem:[#allocation7 + $0x48] sm:$0xff]
    %v284 = vld [vmem:[#allocation7 + $0x50] sm:$0xff]
    %v285 = vld [vmem:[#allocation7 + $0x58] sm:$0xff]
    %v286 = vld [vmem:[#allocation7 + $0x60] sm:$0xff]
    %v287 = vld [vmem:[#allocation7 + $0x68] sm:$0xff]
    %v288 = vld [vmem:[#allocation7 + $0x70] sm:$0xff]
    %v289 = vld [vmem:[#allocation7 + $0x78] sm:$0xff]
    %v290 = vld [vmem:[%s6] sm:$0x1]
    %v292 = vlaneseq
    %v293 = vshrl.u32 %v292, 7
    %v294 = vsub.s32 0, %v293
    %v295 = vrot.slane %v290, %v294
    %297 = vmatprep.subr.mxu0 0.0
    %298 = vmatpush1.msra.mxu0 %v274
    %299 = vmatprep.subr.mxu0 0.0
    %300 = vmatpush1.msra.mxu0 %v275
    %301 = vmatprep.subr.mxu0 0.0
    %302 = vmatpush1.msra.mxu0 %v276
    %303 = vmatprep.subr.mxu0 0.0
    %304 = vmatpush1.msra.mxu0 %v277
    %305 = vmatprep.subr.mxu0 0.0
    %306 = vmatpush1.msra.mxu0 %v278
    %307 = vmatprep.subr.mxu0 0.0
    %308 = vmatpush1.msra.mxu0 %v279
    %309 = vmatprep.subr.mxu0 0.0
    %310 = vmatpush1.msra.mxu0 %v280
    %311 = vmatprep.subr.mxu0 0.0
    %312 = vmatpush1.msra.mxu0 %v281
    %313 = vmatprep.subr.mxu0 0.0
    %314 = vmatpush1.msra.mxu0 %v282
    %315 = vmatprep.subr.mxu0 0.0
    %316 = vmatpush1.msra.mxu0 %v283
    %317 = vmatprep.subr.mxu0 0.0
    %318 = vmatpush1.msra.mxu0 %v284
    %319 = vmatprep.subr.mxu0 0.0
    %320 = vmatpush1.msra.mxu0 %v285
    %321 = vmatprep.subr.mxu0 0.0
    %322 = vmatpush1.msra.mxu0 %v286
    %323 = vmatprep.subr.mxu0 0.0
    %324 = vmatpush1.msra.mxu0 %v287
    %325 = vmatprep.subr.mxu0 0.0
    %326 = vmatpush1.msra.mxu0 %v288
    %327 = vmatprep.subr.mxu0 0.0
    %328 = vmatpush1.msra.mxu0 %v289
    %329 = vmatprep.subr.mxu0 0.0
    %330 = vmatpush1.msra.mxu0 0.0
    %331 = vmatprep.subr.mxu0 0.0
    %332 = vmatpush1.msra.mxu0 0.0
    %333 = vmatprep.subr.mxu0 0.0
    %334 = vmatpush1.msra.mxu0 0.0
    %335 = vmatprep.subr.mxu0 0.0
    %336 = vmatpush1.msra.mxu0 0.0
    %337 = vmatprep.subr.mxu0 0.0
    %338 = vmatpush1.msra.mxu0 0.0
    %339 = vmatprep.subr.mxu0 0.0
    %340 = vmatpush1.msra.mxu0 0.0
    %341 = vmatprep.subr.mxu0 0.0
    %342 = vmatpush1.msra.mxu0 0.0
    %343 = vmatprep.subr.mxu0 0.0
    %344 = vmatpush1.msra.mxu0 0.0
    %345 = vmatprep.subr.mxu0 0.0
    %346 = vmatpush1.msra.mxu0 0.0
    %347 = vmatprep.subr.mxu0 0.0
    %348 = vmatpush1.msra.mxu0 0.0
    %349 = vmatprep.subr.mxu0 0.0
    %350 = vmatpush1.msra.mxu0 0.0
    %351 = vmatprep.subr.mxu0 0.0
    %352 = vmatpush1.msra.mxu0 0.0
    %353 = vmatprep.subr.mxu0 0.0
    %354 = vmatpush1.msra.mxu0 0.0
    %355 = vmatprep.subr.mxu0 0.0
    %356 = vmatpush1.msra.mxu0 0.0
    %357 = vmatprep.subr.mxu0 0.0
    %358 = vmatpush1.msra.mxu0 0.0
    %359 = vmatprep.subr.mxu0 0.0
    %360 = vmatpush1.msra.mxu0 0.0
    %361 = vmatprep.mubr.f32.mxu0 0.0
    %362 = vmatmul.mubr.f32.gmra.mrb[0].mxu0 %v272
    %v363 = vpop.f32.mrb[0].mxu0
    %v364 = vadd.f32 %v295, %v363
    %v365 = vpop.f32.mrb[0].mxu0
    %366 = vmatprep.mubr.f32.mxu0 0.0
    %367 = vmatmul.mubr.f32.gmra.mrb[0].mxu0 %v273
    %v368 = vpop.f32.mrb[0].mxu0
    %v369 = vadd.f32 %v295, %v368
    %v370 = vpop.f32.mrb[0].mxu0
    %371 = vdwg.mxu0
    %372 = vst [vmem:[%s7] sm:$0xff] %v364
    %373 = vst [vmem:[%s7 + $0x8] sm:$0xff] %v369
    // Predicated region
    $region46: #{feedforward_geglu.1} parent=1 // pred_check
      _
    $region47: #{feedforward_geglu.1} parent=1 // pred_check_branch
      %375 = sbr.rel (0) target = $region49
    $region48: #{feedforward_geglu.1} parent=1 // pred_region
      _
    $region49: #{feedforward_geglu.1} parent=1 // pred_fallthru
      _
    // Predicated region
    $region50: #{feedforward_geglu.1} parent=1 // pred_check
      _
    $region51: #{feedforward_geglu.1} parent=1 // pred_check_branch
      %377 = sbr.rel (0) target = $region53
    $region52: #{feedforward_geglu.1} parent=1 // pred_region
      _
    $region53: #{feedforward_geglu.1} parent=1 // pred_fallthru
      _
    %378 = vsyncpa [#allocation3], 1
    %379 = vsyncpa [#allocation5], 1
    %380 = vsyncpa [#allocation8], 1

</llo_original>
